<compile_context>
chip_gen: v7x
topology: tpu7x:2x2x1
jax: 0.10.0
libtpu: 0.0.40
codegen_flags: <defaults>
</compile_context>

<pallas_src>
import jax
import jax.numpy as jnp
from jax.experimental import pallas as pl
from jax.experimental.pallas import tpu as pltpu


def _residual_mlp_kernel(x_ref,      # (TM, C)  f32  VMEM
                         mask_ref,   # (TM, 1)  f32  VMEM (per-row drop-path keep)
                         w1_ref,     # (C, H)   bf16 VMEM
                         b1_ref,     # (1, H)   f32  VMEM
                         w2_ref,     # (H, C)   bf16 VMEM (already scaled by 1/6)
                         b2_ref,     # (1, C)   f32  VMEM
                         o_ref):     # (TM, C)  f32  VMEM
    x = x_ref[...]                                           # f32 (TM, C)

    # Linear 1 (bf16 MXU operands, f32 accumulate) + bias
    h = jnp.dot(x.astype(jnp.bfloat16), w1_ref[...],
                preferred_element_type=jnp.float32) + b1_ref[...]

    # Hardswish numerator: h * relu6(h + 3); the /6 is folded into w2.
    h = h * jnp.clip(h + 3.0, 0.0, 6.0)

    # Linear 2 (bf16 MXU operands, f32 accumulate) + bias
    y = jnp.dot(h.astype(jnp.bfloat16), w2_ref[...],
                preferred_element_type=jnp.float32) + b2_ref[...]

    # Residual add with per-row drop-path keep factor (1.0 in eval mode).
    o_ref[...] = (x + y * mask_ref[...]).astype(o_ref.dtype)


def residual_forward(x, params, *, drop=0.0, training=False, key=None, tm=128):
    """x: (B, N, C). Returns x + m(x) [* per-sample drop-path mask if training]."""
    B, N, C = x.shape
    w1, b1, w2, b2 = params
    H = w1.shape[1]
    rows = B * N
    tm = min(tm, rows)

    # Host-side operand prep: bf16 MXU weights, fold hardswish 1/6 into w2.
    w1b = w1.astype(jnp.bfloat16)
    w2b = (w2 * (1.0 / 6.0)).astype(jnp.bfloat16)
    b1f = b1.astype(jnp.float32).reshape(1, H)
    b2f = b2.astype(jnp.float32).reshape(1, C)

    # Per-sample drop-path keep factor, expanded to one value per token row.
    if training and drop > 0.0:
        assert key is not None
        u = jax.random.uniform(key, (B,), dtype=jnp.float32)
        keep = (u >= drop).astype(jnp.float32) / (1.0 - drop)
    else:
        keep = jnp.ones((B,), dtype=jnp.float32)
    row_mask = jnp.repeat(keep, N)[:, None]                  # (B*N, 1)

    xf = x.reshape(rows, C)

    grid_spec = pltpu.PrefetchScalarGridSpec(
        num_scalar_prefetch=0,
        grid=(pl.cdiv(rows, tm),),
        in_specs=[
            pl.BlockSpec((tm, C), lambda i: (i, 0)),    # x rows
            pl.BlockSpec((tm, 1), lambda i: (i, 0)),    # per-row keep mask
            pl.BlockSpec((C, H),  lambda i: (0, 0)),    # w1 (constant block)
            pl.BlockSpec((1, H),  lambda i: (0, 0)),    # b1
            pl.BlockSpec((H, C),  lambda i: (0, 0)),    # w2 (constant block)
            pl.BlockSpec((1, C),  lambda i: (0, 0)),    # b2
        ],
        out_specs=pl.BlockSpec((tm, C), lambda i: (i, 0)),
    )

    out = pl.pallas_call(
        _residual_mlp_kernel,
        out_shape=jax.ShapeDtypeStruct((rows, C), x.dtype),
        grid_spec=grid_spec,
        compiler_params=pltpu.CompilerParams(
            dimension_semantics=("parallel",),
            vmem_limit_bytes=64 * 1024 * 1024),
    )(xf, row_mask, w1b, b1f, w2b, b2f)

    return out.reshape(B, N, C)


def init_params(key, C, H):
    k1, k2, k3, k4 = jax.random.split(key, 4)
    w1 = jax.random.normal(k1, (C, H), jnp.float32) * 0.02
    b1 = jax.random.normal(k2, (1, H), jnp.float32) * 0.02
    w2 = jax.random.normal(k3, (H, C), jnp.float32) * 0.02
    b2 = jax.random.normal(k4, (1, C), jnp.float32) * 0.02
    return (w1, b1, w2, b2)


def _reference(x, params, keep_per_sample):
    """Pure-jnp reference mirroring the kernel's dtype path (bf16 dot, f32 acc)."""
    B, N, C = x.shape
    w1, b1, w2, b2 = params
    w1b = w1.astype(jnp.bfloat16)
    w2b = (w2 * (1.0 / 6.0)).astype(jnp.bfloat16)
    xf = x.reshape(-1, C)
    h = jnp.dot(xf.astype(jnp.bfloat16), w1b,
                preferred_element_type=jnp.float32) + b1
    h = h * jnp.clip(h + 3.0, 0.0, 6.0)
    y = jnp.dot(h.astype(jnp.bfloat16), w2b,
                preferred_element_type=jnp.float32) + b2
    y = y.reshape(B, N, C)
    return x + y * keep_per_sample[:, None, None]


if __name__ == "__main__":
    # Small but MXU/lane-friendly shapes (real LeViT channel width).
    B, N, C, H = 4, 64, 128, 256
    root = jax.random.PRNGKey(0)
    kx, kp, kd = jax.random.split(root, 3)

    x = jax.random.normal(kx, (B, N, C), jnp.float32)
    params = init_params(kp, C, H)

    # --- eval path:  y = x + m(x) ---
    out_eval = jax.block_until_ready(residual_forward(x, params))
    ref_eval = _reference(x, params, jnp.ones((B,), jnp.float32))
    assert jnp.allclose(out_eval, ref_eval, atol=1e-3, rtol=1e-3)

    # --- training path with per-sample drop-path mask:  y = x + m(x) * mask ---
    drop = 0.5
    out_train = jax.block_until_ready(
        residual_forward(x, params, drop=drop, training=True, key=kd))
    u = jax.random.uniform(kd, (B,), dtype=jnp.float32)
    keep = (u >= drop).astype(jnp.float32) / (1.0 - drop)
    ref_train = _reference(x, params, keep)
    assert jnp.allclose(out_train, ref_train, atol=1e-3, rtol=1e-3)

    print("KERNEL_OK")
</pallas_src>

<mosaic_0001>
module attributes {stable_mosaic.version = 11 : i64} {
  func.func @_residual_mlp_kernel(%arg0: i32, %arg1: memref<128x128xf32, #tpu.memory_space<vmem>>, %arg2: memref<128x1xf32, #tpu.memory_space<vmem>>, %arg3: memref<128x256xbf16, #tpu.memory_space<vmem>>, %arg4: memref<1x256xf32, #tpu.memory_space<vmem>>, %arg5: memref<256x128xbf16, #tpu.memory_space<vmem>>, %arg6: memref<1x128xf32, #tpu.memory_space<vmem>>, %arg7: memref<128x128xf32, #tpu.memory_space<vmem>>) attributes {dimension_semantics = [#tpu.dimension_semantics<parallel>], iteration_bounds = array<i64: 2>, scalar_prefetch = 0 : i64, scratch_operands = 0 : i64, tpu.core_type = #tpu.core_type<tc>, window_params = [{transform_indices = @transform_0, window_bounds = array<i64: 128, 128>}, {transform_indices = @transform_1, window_bounds = array<i64: 128, 1>}, {pipeline_mode = #tpu.pipeline_mode<synchronous>, transform_indices = @transform_2, window_bounds = array<i64: 128, 256>}, {pipeline_mode = #tpu.pipeline_mode<synchronous>, transform_indices = @transform_3, window_bounds = array<i64: 1, 256>}, {pipeline_mode = #tpu.pipeline_mode<synchronous>, transform_indices = @transform_4, window_bounds = array<i64: 256, 128>}, {pipeline_mode = #tpu.pipeline_mode<synchronous>, transform_indices = @transform_5, window_bounds = array<i64: 1, 128>}, {transform_indices = @transform_6, window_bounds = array<i64: 128, 128>}]} {
    %c0 = arith.constant 0 : index
    %c0_0 = arith.constant 0 : index
    %0 = vector.load %arg1[%c0, %c0_0] : memref<128x128xf32, #tpu.memory_space<vmem>>, vector<128x128xf32>
    %1 = arith.truncf %0 : vector<128x128xf32> to vector<128x128xbf16>
    %c0_1 = arith.constant 0 : index
    %c0_2 = arith.constant 0 : index
    %2 = vector.load %arg3[%c0_1, %c0_2] : memref<128x256xbf16, #tpu.memory_space<vmem>>, vector<128x256xbf16>
    %cst = arith.constant dense<0.000000e+00> : vector<128x256xf32>
    %3 = tpu.matmul %1, %2, %cst {dimension_numbers = #tpu.dot_dimension_numbers<[1], [0], [0], [1], [0, 0, 1, 1], [], []>} : vector<128x128xbf16>, vector<128x256xbf16>, vector<128x256xf32> -> vector<128x256xf32>
    %c0_3 = arith.constant 0 : index
    %c0_4 = arith.constant 0 : index
    %4 = vector.load %arg4[%c0_3, %c0_4] : memref<1x256xf32, #tpu.memory_space<vmem>>, vector<1x256xf32>
    %5 = vector.broadcast %4 : vector<1x256xf32> to vector<128x256xf32>
    %6 = arith.addf %3, %5 : vector<128x256xf32>
    %cst_5 = arith.constant 3.000000e+00 : f32
    %7 = vector.broadcast %cst_5 : f32 to vector<128x256xf32>
    %8 = arith.addf %6, %7 : vector<128x256xf32>
    %cst_6 = arith.constant 0.000000e+00 : f32
    %cst_7 = arith.constant 6.000000e+00 : f32
    %9 = vector.broadcast %cst_6 : f32 to vector<128x256xf32>
    %10 = arith.maximumf %9, %8 : vector<128x256xf32>
    %11 = vector.broadcast %cst_7 : f32 to vector<128x256xf32>
    %12 = arith.minimumf %11, %10 : vector<128x256xf32>
    %13 = arith.mulf %6, %12 : vector<128x256xf32>
    %14 = arith.truncf %13 : vector<128x256xf32> to vector<128x256xbf16>
    %c0_8 = arith.constant 0 : index
    %c0_9 = arith.constant 0 : index
    %15 = vector.load %arg5[%c0_8, %c0_9] : memref<256x128xbf16, #tpu.memory_space<vmem>>, vector<256x128xbf16>
    %cst_10 = arith.constant dense<0.000000e+00> : vector<128x128xf32>
    %16 = tpu.matmul %14, %15, %cst_10 {dimension_numbers = #tpu.dot_dimension_numbers<[1], [0], [0], [1], [0, 0, 1, 1], [], []>} : vector<128x256xbf16>, vector<256x128xbf16>, vector<128x128xf32> -> vector<128x128xf32>
    %c0_11 = arith.constant 0 : index
    %c0_12 = arith.constant 0 : index
    %17 = vector.load %arg6[%c0_11, %c0_12] : memref<1x128xf32, #tpu.memory_space<vmem>>, vector<1x128xf32>
    %18 = vector.broadcast %17 : vector<1x128xf32> to vector<128x128xf32>
    %19 = arith.addf %16, %18 : vector<128x128xf32>
    %c0_13 = arith.constant 0 : index
    %c0_14 = arith.constant 0 : index
    %20 = vector.load %arg2[%c0_13, %c0_14] : memref<128x1xf32, #tpu.memory_space<vmem>>, vector<128x1xf32>
    %21 = vector.broadcast %20 : vector<128x1xf32> to vector<128x128xf32>
    %22 = arith.mulf %19, %21 : vector<128x128xf32>
    %23 = arith.addf %0, %22 : vector<128x128xf32>
    %c0_15 = arith.constant 0 : index
    %c0_16 = arith.constant 0 : index
    %24 = vector.load %arg7[%c0_15, %c0_16] : memref<128x128xf32, #tpu.memory_space<vmem>>, vector<128x128xf32>
    tpu.vector_store %arg7[%c0_15, %c0_16], %23 {strides = array<i32>} : memref<128x128xf32, #tpu.memory_space<vmem>>, vector<128x128xf32>,
    return
  }
  func.func @transform_0(%arg0: i32) -> (i32, i32) {
    %c0_i32 = arith.constant 0 : i32
    %c0_i32_0 = arith.constant 0 : i32
    return %arg0, %c0_i32 : i32, i32
  }
  func.func @transform_1(%arg0: i32) -> (i32, i32) {
    %c0_i32 = arith.constant 0 : i32
    %c0_i32_0 = arith.constant 0 : i32
    return %arg0, %c0_i32 : i32, i32
  }
  func.func @transform_2(%arg0: i32) -> (i32, i32) {
    %c0_i32 = arith.constant 0 : i32
    %c0_i32_0 = arith.constant 0 : i32
    %c0_i32_1 = arith.constant 0 : i32
    return %c0_i32, %c0_i32_0 : i32, i32
  }
  func.func @transform_3(%arg0: i32) -> (i32, i32) {
    %c0_i32 = arith.constant 0 : i32
    %c0_i32_0 = arith.constant 0 : i32
    %c0_i32_1 = arith.constant 0 : i32
    return %c0_i32, %c0_i32_0 : i32, i32
  }
  func.func @transform_4(%arg0: i32) -> (i32, i32) {
    %c0_i32 = arith.constant 0 : i32
    %c0_i32_0 = arith.constant 0 : i32
    %c0_i32_1 = arith.constant 0 : i32
    return %c0_i32, %c0_i32_0 : i32, i32
  }
  func.func @transform_5(%arg0: i32) -> (i32, i32) {
    %c0_i32 = arith.constant 0 : i32
    %c0_i32_0 = arith.constant 0 : i32
    %c0_i32_1 = arith.constant 0 : i32
    return %c0_i32, %c0_i32_0 : i32, i32
  }
  func.func @transform_6(%arg0: i32) -> (i32, i32) {
    %c0_i32 = arith.constant 0 : i32
    %c0_i32_0 = arith.constant 0 : i32
    return %arg0, %c0_i32 : i32, i32
  }
}

</mosaic_0001>

<llo_original>
// kernel: tpu_custom_call.1
$region0: #{tpu_custom_call.1}
  #allocation0 [shape = 'u32[]', space=smem, size = 0x4, offset = 0x4, fixed_abs, tag = 'smem constant byte address 0x4 - core index']
  #allocation1 [shape = 'u32[144,128]{1,0:T(1,128)}', space=vmem, size = 0x12000, scoped, tag = 'internal scratch']
  %s0 = inlined_call_operand.hbm [shape: f32[256,128], index: 0, kind: input, shape index: {}]
  %s1 = inlined_call_operand.hbm [shape: f32[256,1], index: 1, kind: input, shape index: {}]
  %s2 = inlined_call_operand.hbm [shape: bf16[128,256], index: 2, kind: input, shape index: {}]
  %s3 = inlined_call_operand.hbm [shape: f32[1,256], index: 3, kind: input, shape index: {}]
  %s4 = inlined_call_operand.hbm [shape: bf16[256,128], index: 4, kind: input, shape index: {}]
  %s5 = inlined_call_operand.hbm [shape: f32[1,128], index: 5, kind: input, shape index: {}]
  %s6 = inlined_call_operand.hbm [shape: f32[256,128], index: 6, kind: output, shape index: {}]
  %s7 = sld [smem:[#allocation0]]
  $region81: #{tpu_custom_call.1} parent=0
    _
  %s9 = ssub.s32 1, %s7
  %s10 = scalar_select 0, %s9, %s7
  $region1: #{tpu_custom_call.1} parent=0
    #allocation2 [shape = 'u8[131072]{0}', space=vmem, size = 0x20000, scoped, tag = 'input window, operand 0']
    #allocation3 [shape = 's32[2]{0}', space=sflag, size = 0x8, scoped, tag = 'scoped memory for tpu_custom_call.1']
    #allocation4 [shape = 's32[2]{0}', space=sflag, size = 0x8, scoped, tag = 'scoped memory for tpu_custom_call.1']
    #allocation5 [shape = 'u8[131072]{0}', space=vmem, size = 0x20000, scoped, tag = 'input window, operand 1']
    #allocation6 [shape = 's32[2]{0}', space=sflag, size = 0x8, scoped, tag = 'scoped memory for tpu_custom_call.1']
    #allocation7 [shape = 'u8[65536]{0}', space=vmem, size = 0x10000, scoped, tag = 'input window, operand 2, single buffered']
    #allocation8 [shape = 'u8[1024]{0}', space=vmem, size = 0x400, scoped, tag = 'input window, operand 3, single buffered']
    #allocation9 [shape = 's32[1]{0}', space=sflag, size = 0x4, scoped, tag = 'scoped memory for tpu_custom_call.1']
    #allocation10 [shape = 'u8[65536]{0}', space=vmem, size = 0x10000, scoped, tag = 'input window, operand 4, single buffered']
    #allocation11 [shape = 'u8[512]{0}', space=vmem, size = 0x400, scoped, tag = 'input window, operand 5, single buffered']
    #allocation12 [shape = 's32[1]{0}', space=sflag, size = 0x4, scoped, tag = 'scoped memory for tpu_custom_call.1']
    #allocation13 [shape = 'u8[131072]{0}', space=vmem, size = 0x20000, scoped, tag = 'output window, operand 0']
    %11 = vsyncpa [#allocation3], 0
    %s12 = scalar_lea.sflag [#allocation3], 1
    %13 = vsyncpa %s12, 0
    %14 = vsyncpa [#allocation6], 0
    %s15 = scalar_lea.sflag [#allocation6], 1
    %16 = vsyncpa %s15, 0
    %17 = vsyncpa [#allocation9], 0
    %18 = vsyncpa [#allocation12], 0
    %19 = vsyncpa [#allocation4], 0
    %s20 = scalar_lea.sflag [#allocation4], 1
    %21 = vsyncpa %s20, 0
    loop: start=0, step=1, limit=4
    $region2: #{tpu_custom_call.1} parent=1 // loop_pre_header
      _
    $region3: #{tpu_custom_call.1} parent=1 // loop_header
      %s23 = sphi 0, %s27
      %p24 = scmp.ge.s32.totalorder %s23, 4
      %s33 = sphi 0, %s35
      %s36 = sphi 0, %s33
      %s37 = sphi 0, %s36
      %s53 = sphi 0, %s37
      %s59 = sphi 0, %s61
      %s62 = sphi 0, %s59
      %s63 = sphi 0, %s62
      %s79 = sphi 0, %s63
      %s83 = sphi 0, %s83
      %s85 = sphi 0, %s83
      %s86 = sphi 0, %s85
      %s100 = sphi 0, %s86
      %s104 = sphi 0, %s104
      %s106 = sphi 0, %s104
      %s107 = sphi 0, %s106
      %s121 = sphi 0, %s107
      %s125 = sphi 0, %s125
      %s127 = sphi 0, %s125
      %s128 = sphi 0, %s127
      %s142 = sphi 0, %s128
      %s146 = sphi 0, %s146
      %s148 = sphi 0, %s146
      %s149 = sphi 0, %s148
      %s163 = sphi 0, %s149
      %s169 = sphi 0, %s171
      %s172 = sphi 0, %s169
      %s173 = sphi 0, %s172
      %s189 = sphi 0, %s173
    $region4: #{tpu_custom_call.1} parent=1 // loop_header_branch
      %26 = sbr.rel (%p24) target = $region8
    $region5: #{tpu_custom_call.1} parent=1 // loop_body
      %s28 = ssub.s32 %s23, 1
      %s29 = ssub.s32 %s23, 2
      %s30 = sadd.s32 %s23, 1
      %s31 = ssub.s32 %s23, %s30
      %p32 = scmp.eq.s32.totalorder %s31, 0
      %s34 = sadd.s32 %s33, 1
      %s35 = scalar_select %p32, %s33, %s34
      %p38 = pneg %p32
      %p39 = scmp.eq.s32.totalorder %s23, 1
      %p40 = por %p38, %p39
      %p41 = scmp.ne.s32.totalorder %s33, %s36
      %p42 = scmp.eq.s32.totalorder %s23, 0
      %p43 = por %p41, %p42
      %p44 = scmp.ne.s32.totalorder %s33, %s36
      %p45 = scmp.eq.s32.totalorder %s28, 1
      %p46 = por %p44, %p45
      %p47 = scmp.ne.s32.totalorder %s36, %s37
      %p48 = scmp.eq.s32.totalorder %s28, 0
      %p49 = por %p47, %p48
      %p50 = scmp.ne.s32.totalorder %s36, %s37
      %p51 = scmp.eq.s32.totalorder %s29, 1
      %p52 = por %p50, %p51
      %p54 = scmp.ne.s32.totalorder %s37, %s53
      %p55 = scmp.eq.s32.totalorder %s29, 0
      %p56 = por %p54, %p55
      %s57 = ssub.s32 %s23, %s30
      %p58 = scmp.eq.s32.totalorder %s57, 0
      %s60 = sadd.s32 %s59, 1
      %s61 = scalar_select %p58, %s59, %s60
      %p64 = pneg %p58
      %p65 = scmp.eq.s32.totalorder %s23, 1
      %p66 = por %p64, %p65
      %p67 = scmp.ne.s32.totalorder %s59, %s62
      %p68 = scmp.eq.s32.totalorder %s23, 0
      %p69 = por %p67, %p68
      %p70 = scmp.ne.s32.totalorder %s59, %s62
      %p71 = scmp.eq.s32.totalorder %s28, 1
      %p72 = por %p70, %p71
      %p73 = scmp.ne.s32.totalorder %s62, %s63
      %p74 = scmp.eq.s32.totalorder %s28, 0
      %p75 = por %p73, %p74
      %p76 = scmp.ne.s32.totalorder %s62, %s63
      %p77 = scmp.eq.s32.totalorder %s29, 1
      %p78 = por %p76, %p77
      %p80 = scmp.ne.s32.totalorder %s63, %s79
      %p81 = scmp.eq.s32.totalorder %s29, 0
      %p82 = por %p80, %p81
      %s84 = sadd.s32 %s83, 1
      %p87 = scmp.eq.s32.totalorder %s23, 1
      %p88 = scmp.ne.s32.totalorder %s83, %s85
      %p89 = scmp.eq.s32.totalorder %s23, 0
      %p90 = por %p88, %p89
      %p91 = scmp.ne.s32.totalorder %s83, %s85
      %p92 = scmp.eq.s32.totalorder %s28, 1
      %p93 = por %p91, %p92
      %p94 = scmp.ne.s32.totalorder %s85, %s86
      %p95 = scmp.eq.s32.totalorder %s28, 0
      %p96 = por %p94, %p95
      %p97 = scmp.ne.s32.totalorder %s85, %s86
      %p98 = scmp.eq.s32.totalorder %s29, 1
      %p99 = por %p97, %p98
      %p101 = scmp.ne.s32.totalorder %s86, %s100
      %p102 = scmp.eq.s32.totalorder %s29, 0
      %p103 = por %p101, %p102
      %s105 = sadd.s32 %s104, 1
      %p108 = scmp.eq.s32.totalorder %s23, 1
      %p109 = scmp.ne.s32.totalorder %s104, %s106
      %p110 = scmp.eq.s32.totalorder %s23, 0
      %p111 = por %p109, %p110
      %p112 = scmp.ne.s32.totalorder %s104, %s106
      %p113 = scmp.eq.s32.totalorder %s28, 1
      %p114 = por %p112, %p113
      %p115 = scmp.ne.s32.totalorder %s106, %s107
      %p116 = scmp.eq.s32.totalorder %s28, 0
      %p117 = por %p115, %p116
      %p118 = scmp.ne.s32.totalorder %s106, %s107
      %p119 = scmp.eq.s32.totalorder %s29, 1
      %p120 = por %p118, %p119
      %p122 = scmp.ne.s32.totalorder %s107, %s121
      %p123 = scmp.eq.s32.totalorder %s29, 0
      %p124 = por %p122, %p123
      %s126 = sadd.s32 %s125, 1
      %p129 = scmp.eq.s32.totalorder %s23, 1
      %p130 = scmp.ne.s32.totalorder %s125, %s127
      %p131 = scmp.eq.s32.totalorder %s23, 0
      %p132 = por %p130, %p131
      %p133 = scmp.ne.s32.totalorder %s125, %s127
      %p134 = scmp.eq.s32.totalorder %s28, 1
      %p135 = por %p133, %p134
      %p136 = scmp.ne.s32.totalorder %s127, %s128
      %p137 = scmp.eq.s32.totalorder %s28, 0
      %p138 = por %p136, %p137
      %p139 = scmp.ne.s32.totalorder %s127, %s128
      %p140 = scmp.eq.s32.totalorder %s29, 1
      %p141 = por %p139, %p140
      %p143 = scmp.ne.s32.totalorder %s128, %s142
      %p144 = scmp.eq.s32.totalorder %s29, 0
      %p145 = por %p143, %p144
      %s147 = sadd.s32 %s146, 1
      %p150 = scmp.eq.s32.totalorder %s23, 1
      %p151 = scmp.ne.s32.totalorder %s146, %s148
      %p152 = scmp.eq.s32.totalorder %s23, 0
      %p153 = por %p151, %p152
      %p154 = scmp.ne.s32.totalorder %s146, %s148
      %p155 = scmp.eq.s32.totalorder %s28, 1
      %p156 = por %p154, %p155
      %p157 = scmp.ne.s32.totalorder %s148, %s149
      %p158 = scmp.eq.s32.totalorder %s28, 0
      %p159 = por %p157, %p158
      %p160 = scmp.ne.s32.totalorder %s148, %s149
      %p161 = scmp.eq.s32.totalorder %s29, 1
      %p162 = por %p160, %p161
      %p164 = scmp.ne.s32.totalorder %s149, %s163
      %p165 = scmp.eq.s32.totalorder %s29, 0
      %p166 = por %p164, %p165
      %s167 = ssub.s32 %s23, %s30
      %p168 = scmp.eq.s32.totalorder %s167, 0
      %s170 = sadd.s32 %s169, 1
      %s171 = scalar_select %p168, %s169, %s170
      %p174 = pneg %p168
      %p175 = scmp.eq.s32.totalorder %s23, 1
      %p176 = por %p174, %p175
      %p177 = scmp.ne.s32.totalorder %s169, %s172
      %p178 = scmp.eq.s32.totalorder %s23, 0
      %p179 = por %p177, %p178
      %p180 = scmp.ne.s32.totalorder %s169, %s172
      %p181 = scmp.eq.s32.totalorder %s28, 1
      %p182 = por %p180, %p181
      %p183 = scmp.ne.s32.totalorder %s172, %s173
      %p184 = scmp.eq.s32.totalorder %s28, 0
      %p185 = por %p183, %p184
      %p186 = scmp.ne.s32.totalorder %s172, %s173
      %p187 = scmp.eq.s32.totalorder %s29, 1
      %p188 = por %p186, %p187
      %p190 = scmp.ne.s32.totalorder %s173, %s189
      %p191 = scmp.eq.s32.totalorder %s29, 0
      %p192 = por %p190, %p191
      %p193 = scmp.le.s32.totalorder 1, %s23
      %p194 = scmp.lt.s32.totalorder %s23, 3
      %p195 = pnand %p193, %p194
      %p196 = pneg %p195
      // Predicated region
      $region9: #{tpu_custom_call.1} parent=5 // pred_check
        _
      $region10: #{tpu_custom_call.1} parent=5 // pred_check_branch
        %198 = sbr.rel (%p195) target = $region12
      $region11: #{tpu_custom_call.1} parent=5 // pred_region
        %s199 = ssub.s32 %s23, 1
        // Predicated region
        $region13: #{tpu_custom_call.1} parent=11 // pred_check
          %p200 = pneg %p96
        $region14: #{tpu_custom_call.1} parent=11 // pred_check_branch
          %202 = sbr.rel (%p200) target = $region16
        $region15: #{tpu_custom_call.1} parent=11 // pred_region
          %s204 = ssub.s32 2048, 2048
          %205 = vsyncadd [#allocation6], %s204
          %s206 = sshll.u32 [#allocation7], 4
          %s207 = int_to_ptr.vmem [resolvable:$true] %s206
          %212 = dma.hbm_to_vmem [thread:$0]  %s2, 2048, %s207, [#allocation6], 128, 128, 8
        $region16: #{tpu_custom_call.1} parent=11 // pred_fallthru
          _
        // Predicated region
        $region17: #{tpu_custom_call.1} parent=11 // pred_check
          %p213 = pneg %p117
        $region18: #{tpu_custom_call.1} parent=11 // pred_check_branch
          %215 = sbr.rel (%p213) target = $region20
        $region19: #{tpu_custom_call.1} parent=11 // pred_region
          %s217 = ssub.s32 32, 32
          %218 = vsyncadd [#allocation9], %s217
          %s220 = sshll.u32 [#allocation8], 4
          %s221 = int_to_ptr.vmem [resolvable:$true] %s220
          %223 = dma.hbm_to_vmem [thread:$0]  %s3, 32, %s221, [#allocation9]
        $region20: #{tpu_custom_call.1} parent=11 // pred_fallthru
          _
        // Predicated region
        $region21: #{tpu_custom_call.1} parent=11 // pred_check
          %p224 = pneg %p138
        $region22: #{tpu_custom_call.1} parent=11 // pred_check_branch
          %226 = sbr.rel (%p224) target = $region24
        $region23: #{tpu_custom_call.1} parent=11 // pred_region
          %s228 = ssub.s32 2048, 2048
          %229 = vsyncadd [#allocation9], %s228
          %s230 = sshll.u32 [#allocation10], 4
          %s231 = int_to_ptr.vmem [resolvable:$true] %s230
          %236 = dma.hbm_to_vmem [thread:$0]  %s4, 2048, %s231, [#allocation9], 64, 64, 4
        $region24: #{tpu_custom_call.1} parent=11 // pred_fallthru
          _
        // Predicated region
        $region25: #{tpu_custom_call.1} parent=11 // pred_check
          %p237 = pneg %p159
        $region26: #{tpu_custom_call.1} parent=11 // pred_check_branch
          %239 = sbr.rel (%p237) target = $region28
        $region27: #{tpu_custom_call.1} parent=11 // pred_region
          %s241 = ssub.s32 16, 16
          %242 = vsyncadd [#allocation12], %s241
          %s244 = sshll.u32 [#allocation11], 4
          %s245 = int_to_ptr.vmem [resolvable:$true] %s244
          %247 = dma.hbm_to_vmem [thread:$0]  %s5, 16, %s245, [#allocation12]
        $region28: #{tpu_custom_call.1} parent=11 // pred_fallthru
          _
      $region12: #{tpu_custom_call.1} parent=5 // pred_fallthru
        _
      %p248 = scmp.lt.s32.totalorder %s23, 2
      // Predicated region
      $region29: #{tpu_custom_call.1} parent=5 // pred_check
        %p249 = pneg %p248
      $region30: #{tpu_custom_call.1} parent=5 // pred_check_branch
        %251 = sbr.rel (%p249) target = $region32
      $region31: #{tpu_custom_call.1} parent=5 // pred_region
        // Predicated region
        $region33: #{tpu_custom_call.1} parent=31 // pred_check
          %p252 = pneg %p43
        $region34: #{tpu_custom_call.1} parent=31 // pred_check_branch
          %254 = sbr.rel (%p252) target = $region36
        $region35: #{tpu_custom_call.1} parent=31 // pred_region
          %s255 = sand.u32 %s33, 1
          %s256 = scalar_lea.sflag [#allocation3], %s255
          %s257 = sand.u32 %s33, 1
          %s258 = smul.addr %s257, 128
          %s259 = scalar_lea.vmem [#allocation2], %s258
          %s260 = smul.u32 16, %s23
          %s262 = ssub.s32 2048, 2048
          %263 = vsyncadd %s256, %s262
          %s264 = smul.addr %s260, 128
          %s265 = scalar_lea.hbm %s0, %s264
          %s266 = sshll.u32 %s259, 4
          %s267 = int_to_ptr.vmem [resolvable:$true] %s266
          %272 = dma.hbm_to_vmem [thread:$0]  %s265, 2048, %s267, %s256, 128, 128, 8
        $region36: #{tpu_custom_call.1} parent=31 // pred_fallthru
          _
        // Predicated region
        $region37: #{tpu_custom_call.1} parent=31 // pred_check
          %p273 = pneg %p69
        $region38: #{tpu_custom_call.1} parent=31 // pred_check_branch
          %275 = sbr.rel (%p273) target = $region40
        $region39: #{tpu_custom_call.1} parent=31 // pred_region
          %s276 = sand.u32 %s23, 1
          %s277 = scalar_lea.sflag [#allocation6], %s276
          %s278 = sand.u32 %s59, 1
          %s279 = smul.addr %s278, 128
          %s280 = scalar_lea.vmem [#allocation5], %s279
          %s281 = smul.u32 16, %s23
          %s283 = ssub.s32 2048, 2048
          %284 = vsyncadd %s277, %s283
          %s285 = smul.addr %s281, 128
          %s286 = scalar_lea.hbm %s1, %s285
          %s287 = sshll.u32 %s280, 4
          %s288 = int_to_ptr.vmem [resolvable:$true] %s287
          %293 = dma.hbm_to_vmem [thread:$0]  %s286, 2048, %s288, %s277, 128, 128, 8
        $region40: #{tpu_custom_call.1} parent=31 // pred_fallthru
          _
      $region32: #{tpu_custom_call.1} parent=5 // pred_fallthru
        _
      %p294 = scmp.le.s32.totalorder 1, %s23
      %p295 = scmp.lt.s32.totalorder %s23, 3
      %p296 = pnand %p294, %p295
      %p297 = pneg %p296
      // Predicated region
      $region41: #{tpu_custom_call.1} parent=5 // pred_check
        _
      $region42: #{tpu_custom_call.1} parent=5 // pred_check_branch
        %299 = sbr.rel (%p296) target = $region44
      $region43: #{tpu_custom_call.1} parent=5 // pred_region
        %s300 = ssub.s32 %s23, 1
        %s301 = sand.u32 %s36, 1
        %s302 = scalar_lea.sflag [#allocation3], %s301
        %s303 = sand.u32 %s36, 1
        %s304 = smul.addr %s303, 128
        %s305 = scalar_lea.vmem [#allocation2], %s304
        // Predicated region
        $region45: #{tpu_custom_call.1} parent=43 // pred_check
          %p306 = pneg %p49
        $region46: #{tpu_custom_call.1} parent=43 // pred_check_branch
          %308 = sbr.rel (%p306) target = $region48
        $region47: #{tpu_custom_call.1} parent=43 // pred_region
          %309 = dma.done %s302, 2048
        $region48: #{tpu_custom_call.1} parent=43 // pred_fallthru
          _
        %s310 = sand.u32 %s28, 1
        %s311 = scalar_lea.sflag [#allocation6], %s310
        %s312 = sand.u32 %s62, 1
        %s313 = smul.addr %s312, 128
        %s314 = scalar_lea.vmem [#allocation5], %s313
        // Predicated region
        $region49: #{tpu_custom_call.1} parent=43 // pred_check
          %p315 = pneg %p75
        $region50: #{tpu_custom_call.1} parent=43 // pred_check_branch
          %317 = sbr.rel (%p315) target = $region52
        $region51: #{tpu_custom_call.1} parent=43 // pred_region
          %318 = dma.done %s311, 2048
        $region52: #{tpu_custom_call.1} parent=43 // pred_fallthru
          _
        // Predicated region
        $region53: #{tpu_custom_call.1} parent=43 // pred_check
          %p319 = pneg %p96
        $region54: #{tpu_custom_call.1} parent=43 // pred_check_branch
          %321 = sbr.rel (%p319) target = $region56
        $region55: #{tpu_custom_call.1} parent=43 // pred_region
          %322 = dma.done [#allocation6], 2048
        $region56: #{tpu_custom_call.1} parent=43 // pred_fallthru
          _
        // Predicated region
        $region57: #{tpu_custom_call.1} parent=43 // pred_check
          %p323 = pneg %p117
        $region58: #{tpu_custom_call.1} parent=43 // pred_check_branch
          %325 = sbr.rel (%p323) target = $region60
        $region59: #{tpu_custom_call.1} parent=43 // pred_region
          %326 = dma.done [#allocation9], 32
        $region60: #{tpu_custom_call.1} parent=43 // pred_fallthru
          _
        // Predicated region
        $region61: #{tpu_custom_call.1} parent=43 // pred_check
          %p327 = pneg %p138
        $region62: #{tpu_custom_call.1} parent=43 // pred_check_branch
          %329 = sbr.rel (%p327) target = $region64
        $region63: #{tpu_custom_call.1} parent=43 // pred_region
          %330 = dma.done [#allocation9], 2048
        $region64: #{tpu_custom_call.1} parent=43 // pred_fallthru
          _
        // Predicated region
        $region65: #{tpu_custom_call.1} parent=43 // pred_check
          %p331 = pneg %p159
        $region66: #{tpu_custom_call.1} parent=43 // pred_check_branch
          %333 = sbr.rel (%p331) target = $region68
        $region67: #{tpu_custom_call.1} parent=43 // pred_region
          %334 = dma.done [#allocation12], 16
        $region68: #{tpu_custom_call.1} parent=43 // pred_fallthru
          _
        %s335 = sand.u32 %s36, 1
        %s336 = scalar_lea.sflag [#allocation3], %s335
        %s337 = sand.u32 %s36, 1
        %s338 = smul.addr %s337, 128
        %s339 = scalar_lea.vmem [#allocation2], %s338
        %p340 = pneg %p49
        %p341 = pneg %p46
        %s342 = sand.u32 %s28, 1
        %s343 = scalar_lea.sflag [#allocation6], %s342
        %s344 = sand.u32 %s62, 1
        %s345 = smul.addr %s344, 128
        %s346 = scalar_lea.vmem [#allocation5], %s345
        %p347 = pneg %p75
        %p348 = pneg %p72
        %p349 = pneg %p96
        %p350 = pneg %p93
        %p351 = pneg %p117
        %p352 = pneg %p114
        %p353 = pneg %p138
        %p354 = pneg %p135
        %p355 = pneg %p159
        %p356 = pneg %p156
        %p357 = pneg %p185
        %p358 = pneg %p182
        %s359 = sand.u32 %s172, 1
        %s360 = scalar_lea.sflag [#allocation4], %s359
        %s361 = sand.u32 %s172, 1
        %s362 = smul.addr %s361, 128
        %s363 = scalar_lea.vmem [#allocation13], %s362
        %s364 = smul.u32 16, %s28
        %s365 = smul.u32 16, %s28
        %s366 = smul.u32 16, %s28
        %v368 = vld [vmem:[%s305] sm:$0xff]
        %v369 = vld [vmem:[%s305 + $0x8] sm:$0xff]
        %v370 = vld [vmem:[%s305 + $0x10] sm:$0xff]
        %v371 = vld [vmem:[%s305 + $0x18] sm:$0xff]
        %v372 = vld [vmem:[%s305 + $0x20] sm:$0xff]
        %v373 = vld [vmem:[%s305 + $0x28] sm:$0xff]
        %v374 = vld [vmem:[%s305 + $0x30] sm:$0xff]
        %v375 = vld [vmem:[%s305 + $0x38] sm:$0xff]
        %v376 = vld [vmem:[%s305 + $0x40] sm:$0xff]
        %v377 = vld [vmem:[%s305 + $0x48] sm:$0xff]
        %v378 = vld [vmem:[%s305 + $0x50] sm:$0xff]
        %v379 = vld [vmem:[%s305 + $0x58] sm:$0xff]
        %v380 = vld [vmem:[%s305 + $0x60] sm:$0xff]
        %v381 = vld [vmem:[%s305 + $0x68] sm:$0xff]
        %v382 = vld [vmem:[%s305 + $0x70] sm:$0xff]
        %v383 = vld [vmem:[%s305 + $0x78] sm:$0xff]
        %v384 = vpack.c.bf16 %v369, %v368
        %v385 = vpack.c.bf16 %v371, %v370
        %v386 = vpack.c.bf16 %v373, %v372
        %v387 = vpack.c.bf16 %v375, %v374
        %v388 = vpack.c.bf16 %v377, %v376
        %v389 = vpack.c.bf16 %v379, %v378
        %v390 = vpack.c.bf16 %v381, %v380
        %v391 = vpack.c.bf16 %v383, %v382
        %v392 = vld [vmem:[#allocation7] sm:$0xff]
        %v393 = vld [vmem:[#allocation7 + $0x8] sm:$0xff]
        %v394 = vld [vmem:[#allocation7 + $0x10] sm:$0xff]
        %v395 = vld [vmem:[#allocation7 + $0x18] sm:$0xff]
        %v396 = vld [vmem:[#allocation7 + $0x20] sm:$0xff]
        %v397 = vld [vmem:[#allocation7 + $0x28] sm:$0xff]
        %v398 = vld [vmem:[#allocation7 + $0x30] sm:$0xff]
        %v399 = vld [vmem:[#allocation7 + $0x38] sm:$0xff]
        %v400 = vld [vmem:[#allocation7 + $0x40] sm:$0xff]
        %v401 = vld [vmem:[#allocation7 + $0x48] sm:$0xff]
        %v402 = vld [vmem:[#allocation7 + $0x50] sm:$0xff]
        %v403 = vld [vmem:[#allocation7 + $0x58] sm:$0xff]
        %v404 = vld [vmem:[#allocation7 + $0x60] sm:$0xff]
        %v405 = vld [vmem:[#allocation7 + $0x68] sm:$0xff]
        %v406 = vld [vmem:[#allocation7 + $0x70] sm:$0xff]
        %v407 = vld [vmem:[#allocation7 + $0x78] sm:$0xff]
        %v408 = vld [vmem:[#allocation8] sm:$0x3]
        %v410 = vlaneseq
        %v411 = vshrl.u32 %v410, 7
        %v412 = vsub.s32 0, %v411
        %v413 = vrot.slane %v408, %v412
        %v414 = vlaneseq
        %v415 = vshrl.u32 %v414, 7
        %v416 = vsub.s32 1, %v415
        %v417 = vrot.slane %v408, %v416
        %v436 = vunpack.c.l.b16 %v392
        %v437 = vunpack.c.h.b16 %v392
        %v438 = vunpack.c.l.b16 %v393
        %v439 = vunpack.c.h.b16 %v393
        %v440 = vunpack.c.l.b16 %v394
        %v441 = vunpack.c.h.b16 %v394
        %v442 = vunpack.c.l.b16 %v395
        %v443 = vunpack.c.h.b16 %v395
        %v444 = vunpack.c.l.b16 %v396
        %v445 = vunpack.c.h.b16 %v396
        %v446 = vunpack.c.l.b16 %v397
        %v447 = vunpack.c.h.b16 %v397
        %v448 = vunpack.c.l.b16 %v398
        %v449 = vunpack.c.h.b16 %v398
        %v450 = vunpack.c.l.b16 %v399
        %v451 = vunpack.c.h.b16 %v399
        %v452 = vunpack.c.l.b16 %v400
        %v453 = vunpack.c.h.b16 %v400
        %v454 = vunpack.c.l.b16 %v401
        %v455 = vunpack.c.h.b16 %v401
        %v456 = vunpack.c.l.b16 %v402
        %v457 = vunpack.c.h.b16 %v402
        %v458 = vunpack.c.l.b16 %v403
        %v459 = vunpack.c.h.b16 %v403
        %v460 = vunpack.c.l.b16 %v404
        %v461 = vunpack.c.h.b16 %v404
        %v462 = vunpack.c.l.b16 %v405
        %v463 = vunpack.c.h.b16 %v405
        %v464 = vunpack.c.l.b16 %v406
        %v465 = vunpack.c.h.b16 %v406
        %v466 = vunpack.c.l.b16 %v407
        %v467 = vunpack.c.h.b16 %v407
        %v468 = vpack.c.b16 %v438, %v436
        %v469 = vpack.c.b16 %v439, %v437
        %v470 = vpack.c.b16 %v442, %v440
        %v471 = vpack.c.b16 %v443, %v441
        %v472 = vpack.c.b16 %v446, %v444
        %v473 = vpack.c.b16 %v447, %v445
        %v474 = vpack.c.b16 %v450, %v448
        %v475 = vpack.c.b16 %v451, %v449
        %v476 = vpack.c.b16 %v454, %v452
        %v477 = vpack.c.b16 %v455, %v453
        %v478 = vpack.c.b16 %v458, %v456
        %v479 = vpack.c.b16 %v459, %v457
        %v480 = vpack.c.b16 %v462, %v460
        %v481 = vpack.c.b16 %v463, %v461
        %v482 = vpack.c.b16 %v466, %v464
        %v483 = vpack.c.b16 %v467, %v465
        %500 = vmatprep.subr.bf16.mxu0 %v469
        %501 = vmatpush1.bf16.msra.mxu0 %v468
        %502 = vmatprep.subr.bf16.mxu0 %v471
        %503 = vmatpush1.bf16.msra.mxu0 %v470
        %504 = vmatprep.subr.bf16.mxu0 %v473
        %505 = vmatpush1.bf16.msra.mxu0 %v472
        %506 = vmatprep.subr.bf16.mxu0 %v475
        %507 = vmatpush1.bf16.msra.mxu0 %v474
        %508 = vmatprep.subr.bf16.mxu0 %v477
        %509 = vmatpush1.bf16.msra.mxu0 %v476
        %510 = vmatprep.subr.bf16.mxu0 %v479
        %511 = vmatpush1.bf16.msra.mxu0 %v478
        %512 = vmatprep.subr.bf16.mxu0 %v481
        %513 = vmatpush1.bf16.msra.mxu0 %v480
        %514 = vmatprep.subr.bf16.mxu0 %v483
        %515 = vmatpush1.bf16.msra.mxu0 %v482
        %516 = vmatprep.subr.bf16.mxu0 0
        %517 = vmatpush1.bf16.msra.mxu0 0
        %518 = vmatprep.subr.bf16.mxu0 0
        %519 = vmatpush1.bf16.msra.mxu0 0
        %520 = vmatprep.subr.bf16.mxu0 0
        %521 = vmatpush1.bf16.msra.mxu0 0
        %522 = vmatprep.subr.bf16.mxu0 0
        %523 = vmatpush1.bf16.msra.mxu0 0
        %524 = vmatprep.subr.bf16.mxu0 0
        %525 = vmatpush1.bf16.msra.mxu0 0
        %526 = vmatprep.subr.bf16.mxu0 0
        %527 = vmatpush1.bf16.msra.mxu0 0
        %528 = vmatprep.subr.bf16.mxu0 0
        %529 = vmatpush1.bf16.msra.mxu0 0
        %530 = vmatprep.subr.bf16.mxu0 0
        %531 = vmatpush1.bf16.msra.mxu0 0
        %532 = vmatprep.mubr.bf16.mxu0 0
        %533 = vmatmul.mubr.bf16.gmra.mrb[0].mxu0 %v384
        %v534 = vpop.f32.mrb[0].mxu0
        %v535 = vadd.f32 %v413, %v534
        %v536 = vpop.f32.mrb[0].mxu0
        %v537 = vadd.f32 %v417, %v536
        %v538 = vpop.f32.mrb[0].mxu0
        %v539 = vadd.f32 %v413, %v538
        %v540 = vpop.f32.mrb[0].mxu0
        %v541 = vadd.f32 %v417, %v540
        %542 = vmatprep.mubr.bf16.mxu0 0
        %543 = vmatmul.mubr.bf16.gmra.mrb[0].mxu0 %v385
        %v544 = vpop.f32.mrb[0].mxu0
        %v545 = vadd.f32 %v413, %v544
        %v546 = vpop.f32.mrb[0].mxu0
        %v547 = vadd.f32 %v417, %v546
        %v548 = vpop.f32.mrb[0].mxu0
        %v549 = vadd.f32 %v413, %v548
        %v550 = vpop.f32.mrb[0].mxu0
        %v551 = vadd.f32 %v417, %v550
        %552 = vmatprep.mubr.bf16.mxu0 0
        %553 = vmatmul.mubr.bf16.gmra.mrb[0].mxu0 %v386
        %v554 = vpop.f32.mrb[0].mxu0
        %v555 = vadd.f32 %v413, %v554
        %v556 = vpop.f32.mrb[0].mxu0
        %v557 = vadd.f32 %v417, %v556
        %v558 = vpop.f32.mrb[0].mxu0
        %v559 = vadd.f32 %v413, %v558
        %v560 = vpop.f32.mrb[0].mxu0
        %v561 = vadd.f32 %v417, %v560
        %562 = vmatprep.mubr.bf16.mxu0 0
        %563 = vmatmul.mubr.bf16.gmra.mrb[0].mxu0 %v387
        %v564 = vpop.f32.mrb[0].mxu0
        %v565 = vadd.f32 %v413, %v564
        %v566 = vpop.f32.mrb[0].mxu0
        %v567 = vadd.f32 %v417, %v566
        %v568 = vpop.f32.mrb[0].mxu0
        %v569 = vadd.f32 %v413, %v568
        %v570 = vpop.f32.mrb[0].mxu0
        %v571 = vadd.f32 %v417, %v570
        %572 = vmatprep.mubr.bf16.mxu0 0
        %573 = vmatmul.mubr.bf16.gmra.mrb[0].mxu0 %v388
        %v574 = vpop.f32.mrb[0].mxu0
        %v575 = vadd.f32 %v413, %v574
        %v576 = vpop.f32.mrb[0].mxu0
        %v577 = vadd.f32 %v417, %v576
        %v578 = vpop.f32.mrb[0].mxu0
        %v579 = vadd.f32 %v413, %v578
        %v580 = vpop.f32.mrb[0].mxu0
        %v581 = vadd.f32 %v417, %v580
        %582 = vmatprep.mubr.bf16.mxu0 0
        %583 = vmatmul.mubr.bf16.gmra.mrb[0].mxu0 %v389
        %v584 = vpop.f32.mrb[0].mxu0
        %v585 = vadd.f32 %v413, %v584
        %v586 = vpop.f32.mrb[0].mxu0
        %v587 = vadd.f32 %v417, %v586
        %v588 = vpop.f32.mrb[0].mxu0
        %v589 = vadd.f32 %v413, %v588
        %v590 = vpop.f32.mrb[0].mxu0
        %v591 = vadd.f32 %v417, %v590
        %592 = vmatprep.mubr.bf16.mxu0 0
        %593 = vmatmul.mubr.bf16.gmra.mrb[0].mxu0 %v390
        %v594 = vpop.f32.mrb[0].mxu0
        %v595 = vadd.f32 %v413, %v594
        %v596 = vpop.f32.mrb[0].mxu0
        %v597 = vadd.f32 %v417, %v596
        %v598 = vpop.f32.mrb[0].mxu0
        %v599 = vadd.f32 %v413, %v598
        %v600 = vpop.f32.mrb[0].mxu0
        %v601 = vadd.f32 %v417, %v600
        %602 = vmatprep.mubr.bf16.mxu0 0
        %603 = vmatmul.mubr.bf16.gmra.mrb[0].mxu0 %v391
        %v604 = vpop.f32.mrb[0].mxu0
        %v605 = vadd.f32 %v413, %v604
        %v606 = vpop.f32.mrb[0].mxu0
        %v607 = vadd.f32 %v417, %v606
        %v608 = vpop.f32.mrb[0].mxu0
        %v609 = vadd.f32 %v413, %v608
        %v610 = vpop.f32.mrb[0].mxu0
        %v611 = vadd.f32 %v417, %v610
        %612 = vdwg.mxu0
        %v613 = vadd.f32 %v535, 3.0
        %v614 = vadd.f32 %v537, 3.0
        %v615 = vadd.f32 %v539, 3.0
        %v616 = vadd.f32 %v541, 3.0
        %v617 = vadd.f32 %v545, 3.0
        %v618 = vadd.f32 %v547, 3.0
        %v619 = vadd.f32 %v549, 3.0
        %v620 = vadd.f32 %v551, 3.0
        %v621 = vadd.f32 %v555, 3.0
        %v622 = vadd.f32 %v557, 3.0
        %v623 = vadd.f32 %v559, 3.0
        %v624 = vadd.f32 %v561, 3.0
        %v625 = vadd.f32 %v565, 3.0
        %v626 = vadd.f32 %v567, 3.0
        %v627 = vadd.f32 %v569, 3.0
        %v628 = vadd.f32 %v571, 3.0
        %v629 = vadd.f32 %v575, 3.0
        %v630 = vadd.f32 %v577, 3.0
        %v631 = vadd.f32 %v579, 3.0
        %v632 = vadd.f32 %v581, 3.0
        %v633 = vadd.f32 %v585, 3.0
        %v634 = vadd.f32 %v587, 3.0
        %v635 = vadd.f32 %v589, 3.0
        %v636 = vadd.f32 %v591, 3.0
        %v637 = vadd.f32 %v595, 3.0
        %v638 = vadd.f32 %v597, 3.0
        %v639 = vadd.f32 %v599, 3.0
        %v640 = vadd.f32 %v601, 3.0
        %v641 = vadd.f32 %v605, 3.0
        %v642 = vadd.f32 %v607, 3.0
        %v643 = vadd.f32 %v609, 3.0
        %v644 = vadd.f32 %v611, 3.0
        %v645 = vmax.f32 %v613, 0.0
        %v646 = vmax.f32 %v614, 0.0
        %v647 = vmax.f32 %v615, 0.0
        %v648 = vmax.f32 %v616, 0.0
        %v649 = vmax.f32 %v617, 0.0
        %v650 = vmax.f32 %v618, 0.0
        %v651 = vmax.f32 %v619, 0.0
        %v652 = vmax.f32 %v620, 0.0
        %v653 = vmax.f32 %v621, 0.0
        %v654 = vmax.f32 %v622, 0.0
        %v655 = vmax.f32 %v623, 0.0
        %v656 = vmax.f32 %v624, 0.0
        %v657 = vmax.f32 %v625, 0.0
        %v658 = vmax.f32 %v626, 0.0
        %v659 = vmax.f32 %v627, 0.0
        %v660 = vmax.f32 %v628, 0.0
        %v661 = vmax.f32 %v629, 0.0
        %v662 = vmax.f32 %v630, 0.0
        %v663 = vmax.f32 %v631, 0.0
        %v664 = vmax.f32 %v632, 0.0
        %v665 = vmax.f32 %v633, 0.0
        %v666 = vmax.f32 %v634, 0.0
        %v667 = vmax.f32 %v635, 0.0
        %v668 = vmax.f32 %v636, 0.0
        %v669 = vmax.f32 %v637, 0.0
        %v670 = vmax.f32 %v638, 0.0
        %v671 = vmax.f32 %v639, 0.0
        %v672 = vmax.f32 %v640, 0.0
        %v673 = vmax.f32 %v641, 0.0
        %v674 = vmax.f32 %v642, 0.0
        %v675 = vmax.f32 %v643, 0.0
        %v676 = vmax.f32 %v644, 0.0
        %v677 = vmin.f32 %v645, 6.0
        %v678 = vmin.f32 %v646, 6.0
        %v679 = vmin.f32 %v647, 6.0
        %v680 = vmin.f32 %v648, 6.0
        %v681 = vmin.f32 %v649, 6.0
        %v682 = vmin.f32 %v650, 6.0
        %v683 = vmin.f32 %v651, 6.0
        %v684 = vmin.f32 %v652, 6.0
        %v685 = vmin.f32 %v653, 6.0
        %v686 = vmin.f32 %v654, 6.0
        %v687 = vmin.f32 %v655, 6.0
        %v688 = vmin.f32 %v656, 6.0
        %v689 = vmin.f32 %v657, 6.0
        %v690 = vmin.f32 %v658, 6.0
        %v691 = vmin.f32 %v659, 6.0
        %v692 = vmin.f32 %v660, 6.0
        %v693 = vmin.f32 %v661, 6.0
        %v694 = vmin.f32 %v662, 6.0
        %v695 = vmin.f32 %v663, 6.0
        %v696 = vmin.f32 %v664, 6.0
        %v697 = vmin.f32 %v665, 6.0
        %v698 = vmin.f32 %v666, 6.0
        %v699 = vmin.f32 %v667, 6.0
        %v700 = vmin.f32 %v668, 6.0
        %v701 = vmin.f32 %v669, 6.0
        %v702 = vmin.f32 %v670, 6.0
        %v703 = vmin.f32 %v671, 6.0
        %v704 = vmin.f32 %v672, 6.0
        %v705 = vmin.f32 %v673, 6.0
        %v706 = vmin.f32 %v674, 6.0
        %v707 = vmin.f32 %v675, 6.0
        %v708 = vmin.f32 %v676, 6.0
        %v709 = vmul.f32 %v535, %v677
        %v710 = vmul.f32 %v537, %v678
        %v711 = vmul.f32 %v539, %v679
        %v712 = vmul.f32 %v541, %v680
        %v713 = vmul.f32 %v545, %v681
        %v714 = vmul.f32 %v547, %v682
        %v715 = vmul.f32 %v549, %v683
        %v716 = vmul.f32 %v551, %v684
        %v717 = vmul.f32 %v555, %v685
        %v718 = vmul.f32 %v557, %v686
        %v719 = vmul.f32 %v559, %v687
        %v720 = vmul.f32 %v561, %v688
        %v721 = vmul.f32 %v565, %v689
        %v722 = vmul.f32 %v567, %v690
        %v723 = vmul.f32 %v569, %v691
        %v724 = vmul.f32 %v571, %v692
        %v725 = vmul.f32 %v575, %v693
        %v726 = vmul.f32 %v577, %v694
        %v727 = vmul.f32 %v579, %v695
        %v728 = vmul.f32 %v581, %v696
        %v729 = vmul.f32 %v585, %v697
        %v730 = vmul.f32 %v587, %v698
        %v731 = vmul.f32 %v589, %v699
        %v732 = vmul.f32 %v591, %v700
        %v733 = vmul.f32 %v595, %v701
        %v734 = vmul.f32 %v597, %v702
        %v735 = vmul.f32 %v599, %v703
        %v736 = vmul.f32 %v601, %v704
        %v737 = vmul.f32 %v605, %v705
        %v738 = vmul.f32 %v607, %v706
        %v739 = vmul.f32 %v609, %v707
        %v740 = vmul.f32 %v611, %v708
        %v741 = vpack.c.bf16 %v711, %v709
        %v742 = vpack.c.bf16 %v712, %v710
        %v743 = vpack.c.bf16 %v715, %v713
        %v744 = vpack.c.bf16 %v716, %v714
        %v745 = vpack.c.bf16 %v719, %v717
        %v746 = vpack.c.bf16 %v720, %v718
        %v747 = vpack.c.bf16 %v723, %v721
        %v748 = vpack.c.bf16 %v724, %v722
        %v749 = vpack.c.bf16 %v727, %v725
        %v750 = vpack.c.bf16 %v728, %v726
        %v751 = vpack.c.bf16 %v731, %v729
        %v752 = vpack.c.bf16 %v732, %v730
        %v753 = vpack.c.bf16 %v735, %v733
        %v754 = vpack.c.bf16 %v736, %v734
        %v755 = vpack.c.bf16 %v739, %v737
        %v756 = vpack.c.bf16 %v740, %v738
        %v757 = vld [vmem:[#allocation10] sm:$0xf]
        %v758 = vld [vmem:[#allocation10 + $0x4] sm:$0xf]
        %v759 = vld [vmem:[#allocation10 + $0x8] sm:$0xf]
        %v760 = vld [vmem:[#allocation10 + $0xc] sm:$0xf]
        %v761 = vld [vmem:[#allocation10 + $0x10] sm:$0xf]
        %v762 = vld [vmem:[#allocation10 + $0x14] sm:$0xf]
        %v763 = vld [vmem:[#allocation10 + $0x18] sm:$0xf]
        %v764 = vld [vmem:[#allocation10 + $0x1c] sm:$0xf]
        %v765 = vld [vmem:[#allocation10 + $0x20] sm:$0xf]
        %v766 = vld [vmem:[#allocation10 + $0x24] sm:$0xf]
        %v767 = vld [vmem:[#allocation10 + $0x28] sm:$0xf]
        %v768 = vld [vmem:[#allocation10 + $0x2c] sm:$0xf]
        %v769 = vld [vmem:[#allocation10 + $0x30] sm:$0xf]
        %v770 = vld [vmem:[#allocation10 + $0x34] sm:$0xf]
        %v771 = vld [vmem:[#allocation10 + $0x38] sm:$0xf]
        %v772 = vld [vmem:[#allocation10 + $0x3c] sm:$0xf]
        %v773 = vld [vmem:[#allocation10 + $0x40] sm:$0xf]
        %v774 = vld [vmem:[#allocation10 + $0x44] sm:$0xf]
        %v775 = vld [vmem:[#allocation10 + $0x48] sm:$0xf]
        %v776 = vld [vmem:[#allocation10 + $0x4c] sm:$0xf]
        %v777 = vld [vmem:[#allocation10 + $0x50] sm:$0xf]
        %v778 = vld [vmem:[#allocation10 + $0x54] sm:$0xf]
        %v779 = vld [vmem:[#allocation10 + $0x58] sm:$0xf]
        %v780 = vld [vmem:[#allocation10 + $0x5c] sm:$0xf]
        %v781 = vld [vmem:[#allocation10 + $0x60] sm:$0xf]
        %v782 = vld [vmem:[#allocation10 + $0x64] sm:$0xf]
        %v783 = vld [vmem:[#allocation10 + $0x68] sm:$0xf]
        %v784 = vld [vmem:[#allocation10 + $0x6c] sm:$0xf]
        %v785 = vld [vmem:[#allocation10 + $0x70] sm:$0xf]
        %v786 = vld [vmem:[#allocation10 + $0x74] sm:$0xf]
        %v787 = vld [vmem:[#allocation10 + $0x78] sm:$0xf]
        %v788 = vld [vmem:[#allocation10 + $0x7c] sm:$0xf]
        %v789 = vld [vmem:[#allocation11] sm:$0x1]
        %v791 = vlaneseq
        %v792 = vshrl.u32 %v791, 7
        %v793 = vsub.s32 0, %v792
        %v794 = vrot.slane %v789, %v793
        %v828 = vunpack.c.l.b16 %v757
        %v829 = vunpack.c.l.b16 %v758
        %v830 = vunpack.c.l.b16 %v759
        %v831 = vunpack.c.l.b16 %v760
        %v832 = vunpack.c.l.b16 %v761
        %v833 = vunpack.c.l.b16 %v762
        %v834 = vunpack.c.l.b16 %v763
        %v835 = vunpack.c.l.b16 %v764
        %v836 = vunpack.c.l.b16 %v765
        %v837 = vunpack.c.l.b16 %v766
        %v838 = vunpack.c.l.b16 %v767
        %v839 = vunpack.c.l.b16 %v768
        %v840 = vunpack.c.l.b16 %v769
        %v841 = vunpack.c.l.b16 %v770
        %v842 = vunpack.c.l.b16 %v771
        %v843 = vunpack.c.l.b16 %v772
        %v844 = vunpack.c.l.b16 %v773
        %v845 = vunpack.c.l.b16 %v774
        %v846 = vunpack.c.l.b16 %v775
        %v847 = vunpack.c.l.b16 %v776
        %v848 = vunpack.c.l.b16 %v777
        %v849 = vunpack.c.l.b16 %v778
        %v850 = vunpack.c.l.b16 %v779
        %v851 = vunpack.c.l.b16 %v780
        %v852 = vunpack.c.l.b16 %v781
        %v853 = vunpack.c.l.b16 %v782
        %v854 = vunpack.c.l.b16 %v783
        %v855 = vunpack.c.l.b16 %v784
        %v856 = vunpack.c.l.b16 %v785
        %v857 = vunpack.c.l.b16 %v786
        %v858 = vunpack.c.l.b16 %v787
        %v859 = vunpack.c.l.b16 %v788
        %v860 = vpack.c.b16 %v829, %v828
        %v861 = vpack.c.b16 %v831, %v830
        %v862 = vpack.c.b16 %v833, %v832
        %v863 = vpack.c.b16 %v835, %v834
        %v864 = vpack.c.b16 %v837, %v836
        %v865 = vpack.c.b16 %v839, %v838
        %v866 = vpack.c.b16 %v841, %v840
        %v867 = vpack.c.b16 %v843, %v842
        %v868 = vpack.c.b16 %v845, %v844
        %v869 = vpack.c.b16 %v847, %v846
        %v870 = vpack.c.b16 %v849, %v848
        %v871 = vpack.c.b16 %v851, %v850
        %v872 = vpack.c.b16 %v853, %v852
        %v873 = vpack.c.b16 %v855, %v854
        %v874 = vpack.c.b16 %v857, %v856
        %v875 = vpack.c.b16 %v859, %v858
        %892 = vmatprep.subr.bf16.mxu0 0
        %893 = vmatpush1.bf16.msra.mxu0 %v860
        %894 = vmatprep.subr.bf16.mxu0 0
        %895 = vmatpush1.bf16.msra.mxu0 %v861
        %896 = vmatprep.subr.bf16.mxu0 0
        %897 = vmatpush1.bf16.msra.mxu0 %v862
        %898 = vmatprep.subr.bf16.mxu0 0
        %899 = vmatpush1.bf16.msra.mxu0 %v863
        %900 = vmatprep.subr.bf16.mxu0 0
        %901 = vmatpush1.bf16.msra.mxu0 %v864
        %902 = vmatprep.subr.bf16.mxu0 0
        %903 = vmatpush1.bf16.msra.mxu0 %v865
        %904 = vmatprep.subr.bf16.mxu0 0
        %905 = vmatpush1.bf16.msra.mxu0 %v866
        %906 = vmatprep.subr.bf16.mxu0 0
        %907 = vmatpush1.bf16.msra.mxu0 %v867
        %908 = vmatprep.subr.bf16.mxu0 0
        %909 = vmatpush1.bf16.msra.mxu0 %v868
        %910 = vmatprep.subr.bf16.mxu0 0
        %911 = vmatpush1.bf16.msra.mxu0 %v869
        %912 = vmatprep.subr.bf16.mxu0 0
        %913 = vmatpush1.bf16.msra.mxu0 %v870
        %914 = vmatprep.subr.bf16.mxu0 0
        %915 = vmatpush1.bf16.msra.mxu0 %v871
        %916 = vmatprep.subr.bf16.mxu0 0
        %917 = vmatpush1.bf16.msra.mxu0 %v872
        %918 = vmatprep.subr.bf16.mxu0 0
        %919 = vmatpush1.bf16.msra.mxu0 %v873
        %920 = vmatprep.subr.bf16.mxu0 0
        %921 = vmatpush1.bf16.msra.mxu0 %v874
        %922 = vmatprep.subr.bf16.mxu0 0
        %923 = vmatpush1.bf16.msra.mxu0 %v875
        %924 = vmatprep.mubr.bf16.mxu0 %v742
        %925 = vmatmul.mubr.bf16.gmra.mrb[0].mxu0 %v741
        %v926 = vpop.f32.mrb[0].mxu0
        %v927 = vadd.f32 %v794, %v926
        %v928 = vpop.f32.mrb[0].mxu0
        %v929 = vpop.f32.mrb[0].mxu0
        %v930 = vadd.f32 %v794, %v929
        %v931 = vpop.f32.mrb[0].mxu0
        %932 = vmatprep.mubr.bf16.mxu0 %v744
        %933 = vmatmul.mubr.bf16.gmra.mrb[0].mxu0 %v743
        %v934 = vpop.f32.mrb[0].mxu0
        %v935 = vadd.f32 %v794, %v934
        %v936 = vpop.f32.mrb[0].mxu0
        %v937 = vpop.f32.mrb[0].mxu0
        %v938 = vadd.f32 %v794, %v937
        %v939 = vpop.f32.mrb[0].mxu0
        %940 = vmatprep.mubr.bf16.mxu0 %v746
        %941 = vmatmul.mubr.bf16.gmra.mrb[0].mxu0 %v745
        %v942 = vpop.f32.mrb[0].mxu0
        %v943 = vadd.f32 %v794, %v942
        %v944 = vpop.f32.mrb[0].mxu0
        %v945 = vpop.f32.mrb[0].mxu0
        %v946 = vadd.f32 %v794, %v945
        %v947 = vpop.f32.mrb[0].mxu0
        %948 = vmatprep.mubr.bf16.mxu0 %v748
        %949 = vmatmul.mubr.bf16.gmra.mrb[0].mxu0 %v747
        %v950 = vpop.f32.mrb[0].mxu0
        %v951 = vadd.f32 %v794, %v950
        %v952 = vpop.f32.mrb[0].mxu0
        %v953 = vpop.f32.mrb[0].mxu0
        %v954 = vadd.f32 %v794, %v953
        %v955 = vpop.f32.mrb[0].mxu0
        %956 = vmatprep.mubr.bf16.mxu0 %v750
        %957 = vmatmul.mubr.bf16.gmra.mrb[0].mxu0 %v749
        %v958 = vpop.f32.mrb[0].mxu0
        %v959 = vadd.f32 %v794, %v958
        %v960 = vpop.f32.mrb[0].mxu0
        %v961 = vpop.f32.mrb[0].mxu0
        %v962 = vadd.f32 %v794, %v961
        %v963 = vpop.f32.mrb[0].mxu0
        %964 = vmatprep.mubr.bf16.mxu0 %v752
        %965 = vmatmul.mubr.bf16.gmra.mrb[0].mxu0 %v751
        %v966 = vpop.f32.mrb[0].mxu0
        %v967 = vadd.f32 %v794, %v966
        %v968 = vpop.f32.mrb[0].mxu0
        %v969 = vpop.f32.mrb[0].mxu0
        %v970 = vadd.f32 %v794, %v969
        %v971 = vpop.f32.mrb[0].mxu0
        %972 = vmatprep.mubr.bf16.mxu0 %v754
        %973 = vmatmul.mubr.bf16.gmra.mrb[0].mxu0 %v753
        %v974 = vpop.f32.mrb[0].mxu0
        %v975 = vadd.f32 %v794, %v974
        %v976 = vpop.f32.mrb[0].mxu0
        %v977 = vpop.f32.mrb[0].mxu0
        %v978 = vadd.f32 %v794, %v977
        %v979 = vpop.f32.mrb[0].mxu0
        %980 = vmatprep.mubr.bf16.mxu0 %v756
        %981 = vmatmul.mubr.bf16.gmra.mrb[0].mxu0 %v755
        %v982 = vpop.f32.mrb[0].mxu0
        %v983 = vadd.f32 %v794, %v982
        %v984 = vpop.f32.mrb[0].mxu0
        %v985 = vpop.f32.mrb[0].mxu0
        %v986 = vadd.f32 %v794, %v985
        %v987 = vpop.f32.mrb[0].mxu0
        %988 = vdwg.mxu0
        %v989 = vld [vmem:[%s314] sm:$0xff]
        %v990 = vld [vmem:[%s314 + $0x8] sm:$0xff]
        %v991 = vld [vmem:[%s314 + $0x10] sm:$0xff]
        %v992 = vld [vmem:[%s314 + $0x18] sm:$0xff]
        %v993 = vld [vmem:[%s314 + $0x20] sm:$0xff]
        %v994 = vld [vmem:[%s314 + $0x28] sm:$0xff]
        %v995 = vld [vmem:[%s314 + $0x30] sm:$0xff]
        %v996 = vld [vmem:[%s314 + $0x38] sm:$0xff]
        %v997 = vld [vmem:[%s314 + $0x40] sm:$0xff]
        %v998 = vld [vmem:[%s314 + $0x48] sm:$0xff]
        %v999 = vld [vmem:[%s314 + $0x50] sm:$0xff]
        %v1000 = vld [vmem:[%s314 + $0x58] sm:$0xff]
        %v1001 = vld [vmem:[%s314 + $0x60] sm:$0xff]
        %v1002 = vld [vmem:[%s314 + $0x68] sm:$0xff]
        %v1003 = vld [vmem:[%s314 + $0x70] sm:$0xff]
        %v1004 = vld [vmem:[%s314 + $0x78] sm:$0xff]
        %1006 = vset.pattern.permute.xlu0 0
        %1007 = vperm.xlu0 %1006, %v989
        %v1008 = vpop.permute.xlu0 %1007
        %1011 = vset.pattern.permute.xlu0 0
        %1012 = vperm.xlu0 %1011, %v990
        %v1013 = vpop.permute.xlu0 %1012
        %1016 = vset.pattern.permute.xlu0 0
        %1017 = vperm.xlu0 %1016, %v991
        %v1018 = vpop.permute.xlu0 %1017
        %1021 = vset.pattern.permute.xlu0 0
        %1022 = vperm.xlu0 %1021, %v992
        %v1023 = vpop.permute.xlu0 %1022
        %1026 = vset.pattern.permute.xlu0 0
        %1027 = vperm.xlu0 %1026, %v993
        %v1028 = vpop.permute.xlu0 %1027
        %1031 = vset.pattern.permute.xlu0 0
        %1032 = vperm.xlu0 %1031, %v994
        %v1033 = vpop.permute.xlu0 %1032
        %1036 = vset.pattern.permute.xlu0 0
        %1037 = vperm.xlu0 %1036, %v995
        %v1038 = vpop.permute.xlu0 %1037
        %1041 = vset.pattern.permute.xlu0 0
        %1042 = vperm.xlu0 %1041, %v996
        %v1043 = vpop.permute.xlu0 %1042
        %1046 = vset.pattern.permute.xlu0 0
        %1047 = vperm.xlu0 %1046, %v997
        %v1048 = vpop.permute.xlu0 %1047
        %1051 = vset.pattern.permute.xlu0 0
        %1052 = vperm.xlu0 %1051, %v998
        %v1053 = vpop.permute.xlu0 %1052
        %1056 = vset.pattern.permute.xlu0 0
        %1057 = vperm.xlu0 %1056, %v999
        %v1058 = vpop.permute.xlu0 %1057
        %1061 = vset.pattern.permute.xlu0 0
        %1062 = vperm.xlu0 %1061, %v1000
        %v1063 = vpop.permute.xlu0 %1062
        %1066 = vset.pattern.permute.xlu0 0
        %1067 = vperm.xlu0 %1066, %v1001
        %v1068 = vpop.permute.xlu0 %1067
        %1071 = vset.pattern.permute.xlu0 0
        %1072 = vperm.xlu0 %1071, %v1002
        %v1073 = vpop.permute.xlu0 %1072
        %1076 = vset.pattern.permute.xlu0 0
        %1077 = vperm.xlu0 %1076, %v1003
        %v1078 = vpop.permute.xlu0 %1077
        %1081 = vset.pattern.permute.xlu0 0
        %1082 = vperm.xlu0 %1081, %v1004
        %v1083 = vpop.permute.xlu0 %1082
        %v1085 = vmul.f32 %v927, %v1008
        %v1086 = vmul.f32 %v930, %v1013
        %v1087 = vmul.f32 %v935, %v1018
        %v1088 = vmul.f32 %v938, %v1023
        %v1089 = vmul.f32 %v943, %v1028
        %v1090 = vmul.f32 %v946, %v1033
        %v1091 = vmul.f32 %v951, %v1038
        %v1092 = vmul.f32 %v954, %v1043
        %v1093 = vmul.f32 %v959, %v1048
        %v1094 = vmul.f32 %v962, %v1053
        %v1095 = vmul.f32 %v967, %v1058
        %v1096 = vmul.f32 %v970, %v1063
        %v1097 = vmul.f32 %v975, %v1068
        %v1098 = vmul.f32 %v978, %v1073
        %v1099 = vmul.f32 %v983, %v1078
        %v1100 = vmul.f32 %v986, %v1083
        %v1101 = vadd.f32 %v368, %v1085
        %v1102 = vadd.f32 %v369, %v1086
        %v1103 = vadd.f32 %v370, %v1087
        %v1104 = vadd.f32 %v371, %v1088
        %v1105 = vadd.f32 %v372, %v1089
        %v1106 = vadd.f32 %v373, %v1090
        %v1107 = vadd.f32 %v374, %v1091
        %v1108 = vadd.f32 %v375, %v1092
        %v1109 = vadd.f32 %v376, %v1093
        %v1110 = vadd.f32 %v377, %v1094
        %v1111 = vadd.f32 %v378, %v1095
        %v1112 = vadd.f32 %v379, %v1096
        %v1113 = vadd.f32 %v380, %v1097
        %v1114 = vadd.f32 %v381, %v1098
        %v1115 = vadd.f32 %v382, %v1099
        %v1116 = vadd.f32 %v383, %v1100
        %1117 = vst [vmem:[%s363] sm:$0xff] %v1101
        %1118 = vst [vmem:[%s363 + $0x8] sm:$0xff] %v1102
        %1119 = vst [vmem:[%s363 + $0x10] sm:$0xff] %v1103
        %1120 = vst [vmem:[%s363 + $0x18] sm:$0xff] %v1104
        %1121 = vst [vmem:[%s363 + $0x20] sm:$0xff] %v1105
        %1122 = vst [vmem:[%s363 + $0x28] sm:$0xff] %v1106
        %1123 = vst [vmem:[%s363 + $0x30] sm:$0xff] %v1107
        %1124 = vst [vmem:[%s363 + $0x38] sm:$0xff] %v1108
        %1125 = vst [vmem:[%s363 + $0x40] sm:$0xff] %v1109
        %1126 = vst [vmem:[%s363 + $0x48] sm:$0xff] %v1110
        %1127 = vst [vmem:[%s363 + $0x50] sm:$0xff] %v1111
        %1128 = vst [vmem:[%s363 + $0x58] sm:$0xff] %v1112
        %1129 = vst [vmem:[%s363 + $0x60] sm:$0xff] %v1113
        %1130 = vst [vmem:[%s363 + $0x68] sm:$0xff] %v1114
        %1131 = vst [vmem:[%s363 + $0x70] sm:$0xff] %v1115
        %1132 = vst [vmem:[%s363 + $0x78] sm:$0xff] %v1116
        %s1133 = sand.u32 %s172, 1
        %s1134 = scalar_lea.sflag [#allocation4], %s1133
        %s1135 = sand.u32 %s172, 1
        %s1136 = smul.addr %s1135, 128
        %s1137 = scalar_lea.vmem [#allocation13], %s1136
        // Predicated region
        $region69: #{tpu_custom_call.1} parent=43 // pred_check
          %p1138 = pneg %p182
        $region70: #{tpu_custom_call.1} parent=43 // pred_check_branch
          %1140 = sbr.rel (%p1138) target = $region72
        $region71: #{tpu_custom_call.1} parent=43 // pred_region
          %s1141 = smul.u32 16, %s28
          %s1143 = ssub.s32 2048, 2048
          %1144 = vsyncadd %s1134, %s1143
          %s1145 = smul.addr %s1141, 128
          %s1146 = scalar_lea.hbm %s6, %s1145
          %s1147 = sshll.u32 %s1137, 4
          %s1148 = int_to_ptr.vmem [resolvable:$true] %s1147
          %1153 = dma.vmem_to_hbm [thread:$0]  %s1148, 2048, %s1146, %s1134, 128, 128, 8
        $region72: #{tpu_custom_call.1} parent=43 // pred_fallthru
          _
      $region44: #{tpu_custom_call.1} parent=5 // pred_fallthru
        _
      %p1154 = scmp.le.s32.totalorder 2, %s23
      // Predicated region
      $region73: #{tpu_custom_call.1} parent=5 // pred_check
        %p1155 = pneg %p1154
      $region74: #{tpu_custom_call.1} parent=5 // pred_check_branch
        %1157 = sbr.rel (%p1155) target = $region76
      $region75: #{tpu_custom_call.1} parent=5 // pred_region
        %s1158 = ssub.s32 %s23, 2
        // Predicated region
        $region77: #{tpu_custom_call.1} parent=75 // pred_check
          %p1159 = pneg %p188
        $region78: #{tpu_custom_call.1} parent=75 // pred_check_branch
          %1161 = sbr.rel (%p1159) target = $region80
        $region79: #{tpu_custom_call.1} parent=75 // pred_region
          %s1162 = sand.u32 %s173, 1
          %s1163 = scalar_lea.sflag [#allocation4], %s1162
          %s1164 = sand.u32 %s173, 1
          %s1165 = smul.addr %s1164, 128
          %s1166 = scalar_lea.vmem [#allocation13], %s1165
          %1167 = dma.done %s1163, 2048
        $region80: #{tpu_custom_call.1} parent=75 // pred_fallthru
          _
      $region76: #{tpu_custom_call.1} parent=5 // pred_fallthru
        _
    $region6: #{tpu_custom_call.1} parent=1 // loop_footer
      %s27 = sadd.s32 1, %s23
    $region7: #{tpu_custom_call.1} parent=1 // loop_footer_branch
      %22 = sbr.rel target = $region3
    $region8: #{tpu_custom_call.1} parent=1 // loop_exit
      _
    %1168 = vsyncpa [#allocation3], 1
    %s1169 = scalar_lea.sflag [#allocation3], 1
    %1170 = vsyncpa %s1169, 1
    %1171 = vsyncpa [#allocation6], 1
    %s1172 = scalar_lea.sflag [#allocation6], 1
    %1173 = vsyncpa %s1172, 1
    %1174 = vsyncpa [#allocation9], 1
    %1175 = vsyncpa [#allocation12], 1
    %1176 = vsyncpa [#allocation4], 1
    %s1177 = scalar_lea.sflag [#allocation4], 1
    %1178 = vsyncpa %s1177, 1

</llo_original>
